<compile_context>
chip_gen: v7x
topology: tpu7x:2x2x1
jax: 0.10.0
libtpu: 0.0.40
codegen_flags: <defaults>
</compile_context>

<pallas_src>
import functools
import sys

import jax
import jax.numpy as jnp
from jax.experimental import pallas as pl
from jax.experimental.pallas import tpu as pltpu

_LANE = 128     # vreg lane width: feature dims padded to multiples of this
_SUBLANE = 8    # sublane width: row tiles are multiples of this


def _round_up(v, m):
    return (v + m - 1) // m * m


def _vmem_capacity_bytes():
    """Physical VMEM per TensorCore (128 MiB on v5e/v6e, 64 MiB on v7x)."""
    try:
        cap = int(pltpu.get_tpu_info().vmem_capacity_bytes)
        if cap > 0:
            return cap
    except Exception:
        pass
    return 64 << 20  # conservative (v7x-sized) fallback


def _choose_hidden_block(h_p, requested):
    """Largest multiple of 128 that divides h_p exactly and is <= requested
    (exact divisibility avoids OOB garbage leaking into the hidden reduction)."""
    n128 = h_p // _LANE
    cap = max(1, min(n128, max(int(requested), _LANE) // _LANE))
    for d in range(cap, 0, -1):
        if n128 % d == 0:
            return d * _LANE
    return _LANE


# ---------------------------------------------------------------------------
# Kernels
# ---------------------------------------------------------------------------
def _ffn_resident_kernel(x_ref, w1_ref, b1_ref, w2_ref, b2_ref, *rest,
                         norm: bool, eps: float, hidden_true: int):
    """Whole-hidden-row kernel: both (padded) weight matrices resident in VMEM,
    rows of x streamed. Supports the optional LayerNorm."""
    if norm:
        g_ref, beta_ref, o_ref = rest
    else:
        (o_ref,) = rest

    x = x_ref[...]
    if x.dtype != w1_ref.dtype:            # bf16 weights -> bf16 MXU pass
        x = x.astype(w1_ref.dtype)

    # Linear1: [bm, Din_p] @ [Din_p, H_p], f32 accumulate.
    h = jnp.dot(x, w1_ref[...], preferred_element_type=jnp.float32)
    h = h + b1_ref[...]

    if norm:
        # Padded columns of h are exactly zero (zero W1 columns + zero bias),
        # so plain sums over the padded width already equal sums over the true
        # hidden width: no iota/where mask and no extra (bm, H_p) temporaries.
        inv_h = 1.0 / float(hidden_true)
        mean = jnp.sum(h, axis=-1, keepdims=True) * inv_h
        ex2 = jnp.sum(h * h, axis=-1, keepdims=True) * inv_h
        var = jnp.maximum(ex2 - mean * mean, 0.0)
        h = (h - mean) * jax.lax.rsqrt(var + eps)
        # Padded gamma/beta are zero -> padded columns return to exactly zero.
        h = h * g_ref[...] + beta_ref[...]

    # ReLU
    h = jnp.maximum(h, 0.0)

    # TODO(synk): training-mode dropout (p > 0) needs pltpu.prng_* masking;
    # the module default (drop=0 / eval) is the identity.

    # Linear2: [bm, H_p] @ [H_p, Dout_p], f32 accumulate.
    y = jnp.dot(h.astype(w2_ref.dtype), w2_ref[...],
                preferred_element_type=jnp.float32)
    o_ref[...] = (y + b2_ref[...]).astype(o_ref.dtype)


def _ffn_chunked_kernel(x_ref, w1_ref, b1_ref, w2_ref, b2_ref, o_ref, acc_ref):
    """norm=False kernel with the hidden dim as an 'arbitrary' reduction axis:
    W1^T columns / W2^T rows stream in chunks (no weight co-residency) and y
    accumulates in a VMEM scratch. ReLU is elementwise over hidden, so
    sum_k ReLU(x @ W1_k + b1_k) @ W2_k == ReLU(x @ W1 + b1) @ W2."""
    k = pl.program_id(1)

    @pl.when(k == 0)
    def _():
        acc_ref[...] = jnp.zeros_like(acc_ref)

    x = x_ref[...]
    if x.dtype != w1_ref.dtype:
        x = x.astype(w1_ref.dtype)

    h = jnp.dot(x, w1_ref[...], preferred_element_type=jnp.float32)
    h = jnp.maximum(h + b1_ref[...], 0.0)
    acc_ref[...] += jnp.dot(h.astype(w2_ref.dtype), w2_ref[...],
                            preferred_element_type=jnp.float32)

    @pl.when(k == pl.num_programs(1) - 1)
    def _():
        o_ref[...] = (acc_ref[...] + b2_ref[...]).astype(o_ref.dtype)


# ---------------------------------------------------------------------------
# Parameter preparation (one-time, hoisted out of the per-call wrapper)
# ---------------------------------------------------------------------------
def prepare_ffn_params(w1, b1, w2, b2, gamma=None, beta=None, *,
                       norm=False, param_dtype=None):
    """Transpose weights to row-major [in, out] layout and zero-pad all feature
    dims up to multiples of 128 for lane-dense kernel access.

    w1: [H, D_in], b1: [H], w2: [D_out, H], b2: [D_out], gamma/beta: [H].
    For large weight sets (esp. v6e/v7x) pass param_dtype=jnp.bfloat16: weights
    are read once per call, so halving weight bytes halves HBM traffic and
    VMEM residency while accumulation stays f32.
    """
    hidden, d_in = w1.shape
    d_out, hidden2 = w2.shape
    assert hidden2 == hidden
    dt = jnp.dtype(param_dtype) if param_dtype is not None else w1.dtype
    d_in_p = _round_up(d_in, _LANE)
    h_p = _round_up(hidden, _LANE)
    d_out_p = _round_up(d_out, _LANE)

    w1t = jnp.zeros((d_in_p, h_p), dt).at[:d_in, :hidden].set(w1.T.astype(dt))
    w2t = jnp.zeros((h_p, d_out_p), dt).at[:hidden, :d_out].set(w2.T.astype(dt))
    b1p = jnp.zeros((1, h_p), jnp.float32).at[0, :hidden].set(
        b1.astype(jnp.float32))
    b2p = jnp.zeros((1, d_out_p), jnp.float32).at[0, :d_out].set(
        b2.astype(jnp.float32))
    params = {"w1t": w1t, "b1": b1p, "w2t": w2t, "b2": b2p,
              "d_in": d_in, "hidden": hidden, "d_out": d_out}
    if norm:
        assert gamma is not None and beta is not None
        params["gamma"] = jnp.zeros((1, h_p), jnp.float32).at[0, :hidden].set(
            gamma.astype(jnp.float32))
        params["beta"] = jnp.zeros((1, h_p), jnp.float32).at[0, :hidden].set(
            beta.astype(jnp.float32))
    return params


# ---------------------------------------------------------------------------
# Wrapper
# ---------------------------------------------------------------------------
def feedforward_pallas(x, params, *, norm=False, eps=1e-5, block_m=512,
                       hidden_block=None):
    """x: [N, D_in]; params: output of prepare_ffn_params. Returns [N, D_out].

    block_m:      requested row-tile height (rounded to a multiple of 8).
    hidden_block: force the hidden-chunked (norm=False) path with this chunk
                  width; None = auto (chunk only when resident weights would
                  not fit the VMEM budget).
    """
    N, d_in = x.shape
    assert d_in == params["d_in"]
    d_in_p, h_p = params["w1t"].shape
    d_out_p = params["w2t"].shape[1]
    d_out = params["d_out"]
    hidden = params["hidden"]
    out_dtype = x.dtype
    x_bytes = jnp.dtype(x.dtype).itemsize
    o_bytes = jnp.dtype(out_dtype).itemsize
    w_bytes = jnp.dtype(params["w1t"].dtype).itemsize

    if norm and hidden_block is not None:
        raise ValueError("hidden_block chunking requires norm=False "
                         "(LayerNorm needs the full hidden row).")

    # Feature-dim zero padding only — no row-padding copy of x.
    if d_in_p != d_in:
        x = jnp.pad(x, ((0, 0), (0, d_in_p - d_in)))

    # ---- row tile (block_m) selection --------------------------------------
    bm = _round_up(max(int(block_m), _SUBLANE), _SUBLANE)
    bm = min(bm, _round_up(N, _SUBLANE))
    if _round_up(N, _SUBLANE) <= bm:
        # A single tile would cover every row: split in two so the "parallel"
        # row axis can shard across v7x's two TensorCores, but only when each
        # half is still a reasonable MXU tile.
        half = _round_up(pl.cdiv(N, 2), _SUBLANE)
        if half >= 128:
            bm = half

    # ---- generation-aware VMEM budget --------------------------------------
    vmem_cap = _vmem_capacity_bytes()
    vmem_budget = int(vmem_cap * 0.8)   # ~51 MiB on v7x, ~102 MiB on v5e/v6e

    resident_arrays = [params["w1t"], params["b1"], params["w2t"], params["b2"]]
    if norm:
        resident_arrays += [params["gamma"], params["beta"]]
    resident_bytes = sum(int(a.size) * a.dtype.itemsize for a in resident_arrays)

    def resident_need(bm_, copies):
        tiles = 2 * bm_ * d_in_p * x_bytes + 2 * bm_ * d_out_p * o_bytes
        temps = bm_ * h_p * (3 * 4 + 2)      # h, LN temp, bf16 copy of h
        return copies * resident_bytes + tiles + temps + (4 << 20)

    # Prefer shrinking the row tile before giving up on resident weights.
    while resident_need(bm, 2) > vmem_budget and bm > 256:
        bm = _round_up(max(bm // 2, _SUBLANE), _SUBLANE)

    use_chunked = (not norm) and (hidden_block is not None
                                  or resident_need(bm, 1) > vmem_budget)
    if norm and resident_need(bm, 1) > vmem_budget:
        raise ValueError(
            f"Resident FFN weights ({resident_bytes / 2**20:.1f} MiB) + tiles do "
            f"not fit the VMEM budget ({vmem_budget / 2**20:.1f} MiB). Use bf16 "
            "weights (prepare_ffn_params(param_dtype=jnp.bfloat16)) or norm=False "
            "(hidden-chunked path).")

    # Advisory cost estimate so XLA schedules surrounding ops sensibly.
    flops = 2 * N * d_in_p * h_p + 2 * N * h_p * d_out_p
    io_bytes = N * d_in_p * x_bytes + resident_bytes + N * d_out_p * o_bytes
    cost = pl.CostEstimate(flops=int(flops),
                           transcendentals=int(N if norm else 0),
                           bytes_accessed=int(io_bytes))

    if use_chunked:
        th = _choose_hidden_block(h_p, hidden_block if hidden_block else 512)

        def chunked_need(bm_, th_):
            return (2 * (d_in_p * th_ + th_ * d_out_p) * w_bytes  # streamed W1/W2
                    + 2 * th_ * 4 + 2 * d_out_p * 4               # b1 chunk / b2
                    + 2 * bm_ * d_in_p * x_bytes                  # x tile (x2)
                    + 2 * bm_ * d_out_p * o_bytes                 # out tile (x2)
                    + bm_ * d_out_p * 4                           # acc scratch
                    + bm_ * th_ * (2 * 4 + 2)                     # h temporaries
                    + (4 << 20))                                  # headroom

        while chunked_need(bm, th) > vmem_budget and th > _LANE:
            th = _choose_hidden_block(h_p, th - _LANE)
        while chunked_need(bm, th) > vmem_budget and bm > _SUBLANE:
            bm = _round_up(max(bm // 2, _SUBLANE), _SUBLANE)

        grid = (pl.cdiv(N, bm), h_p // th)
        vmem_limit = int(min(max(chunked_need(bm, th), 16 << 20), vmem_budget))

        out_p = pl.pallas_call(
            _ffn_chunked_kernel,
            out_shape=jax.ShapeDtypeStruct((N, d_out_p), out_dtype),
            grid_spec=pltpu.PrefetchScalarGridSpec(
                num_scalar_prefetch=0,
                grid=grid,
                in_specs=[
                    pl.BlockSpec((bm, d_in_p), lambda i, k: (i, 0)),    # x rows
                    pl.BlockSpec((d_in_p, th), lambda i, k: (0, k)),    # W1^T cols
                    pl.BlockSpec((1, th), lambda i, k: (0, k)),         # b1 chunk
                    pl.BlockSpec((th, d_out_p), lambda i, k: (k, 0)),   # W2^T rows
                    pl.BlockSpec((1, d_out_p), lambda i, k: (0, 0)),    # b2
                ],
                out_specs=pl.BlockSpec((bm, d_out_p), lambda i, k: (i, 0)),
                scratch_shapes=[pltpu.VMEM((bm, d_out_p), jnp.float32)],
            ),
            compiler_params=pltpu.CompilerParams(
                dimension_semantics=("parallel", "arbitrary"),
                vmem_limit_bytes=vmem_limit),
            cost_estimate=cost,
        )(x, params["w1t"], params["b1"], params["w2t"], params["b2"])

    else:
        grid = (pl.cdiv(N, bm),)
        vmem_limit = int(min(max(resident_need(bm, 2), 16 << 20), vmem_budget))
        kernel = functools.partial(_ffn_resident_kernel, norm=norm, eps=eps,
                                   hidden_true=hidden)
        args = [x, params["w1t"], params["b1"], params["w2t"], params["b2"]]
        if norm:
            args += [params["gamma"], params["beta"]]

        def build(single_buffer):
            # Resident operands have constant index maps; single-buffer them
            # (pl.Buffered(1)) so they don't burn 2x VMEM.
            res_kw = ({"pipeline_mode": pl.Buffered(1)} if single_buffer else {})
            in_specs = [
                pl.BlockSpec((bm, d_in_p), lambda i: (i, 0)),             # x rows
                pl.BlockSpec((d_in_p, h_p), lambda i: (0, 0), **res_kw),  # W1^T
                pl.BlockSpec((1, h_p), lambda i: (0, 0), **res_kw),       # b1
                pl.BlockSpec((h_p, d_out_p), lambda i: (0, 0), **res_kw), # W2^T
                pl.BlockSpec((1, d_out_p), lambda i: (0, 0), **res_kw),   # b2
            ]
            if norm:
                in_specs += [pl.BlockSpec((1, h_p), lambda i: (0, 0), **res_kw),
                             pl.BlockSpec((1, h_p), lambda i: (0, 0), **res_kw)]
            return pl.pallas_call(
                kernel,
                out_shape=jax.ShapeDtypeStruct((N, d_out_p), out_dtype),
                grid_spec=pltpu.PrefetchScalarGridSpec(
                    num_scalar_prefetch=0,
                    grid=grid,
                    in_specs=in_specs,
                    out_specs=pl.BlockSpec((bm, d_out_p), lambda i: (i, 0)),
                ),
                compiler_params=pltpu.CompilerParams(
                    dimension_semantics=("parallel",),
                    vmem_limit_bytes=vmem_limit),
                cost_estimate=cost,
            )

        if hasattr(pl, "Buffered"):
            try:
                out_p = build(True)(*args)
            except Exception as e:  # intent: Buffered(1) unsupported in lowering
                print("[feedforward_pallas] single-buffered resident specs "
                      f"failed ({type(e).__name__}: {e}); falling back to "
                      "default double buffering (2x resident-weight VMEM).",
                      file=sys.stderr)
                out_p = build(False)(*args)
        else:
            out_p = build(False)(*args)

    return out_p if d_out_p == d_out else out_p[:, :d_out]


# ---------------------------------------------------------------------------
# Reference + init helpers (for validation)
# ---------------------------------------------------------------------------
def orthogonal_init(key, rows, cols, dtype=jnp.float32):
    """Deterministic orthogonal init matching torch.nn.init.orthogonal_."""
    transpose = rows < cols
    shape = (cols, rows) if transpose else (rows, cols)
    a = jax.random.normal(key, shape, dtype=jnp.float32)
    q, r = jnp.linalg.qr(a)
    d = jnp.sign(jnp.diagonal(r))
    q = q * d[None, :]
    if transpose:
        q = q.T
    return q.astype(dtype)


def feedforward_ref(x, w1, b1, w2, b2, gamma, beta, *, norm=False, eps=1e-5):
    h = x @ w1.T + b1
    if norm:
        mean = jnp.mean(h, axis=-1, keepdims=True)
        var = jnp.mean((h - mean) ** 2, axis=-1, keepdims=True)
        h = (h - mean) / jnp.sqrt(var + eps) * gamma + beta
    h = jnp.maximum(h, 0.0)
    return h @ w2.T + b2


if __name__ == "__main__":
    key = jax.random.PRNGKey(0)

    def make_case(k, N, d_in, hid, d_out):
        kx, kw1, kb1, kw2, kb2 = jax.random.split(k, 5)
        x = jax.random.normal(kx, (N, d_in), dtype=jnp.float32)
        w1 = orthogonal_init(kw1, hid, d_in)            # [H, D_in]
        w2 = orthogonal_init(kw2, d_out, hid)           # [D_out, H]
        b1 = jax.random.uniform(kb1, (hid,), minval=-1., maxval=1.) / jnp.sqrt(d_in)
        b2 = jax.random.uniform(kb2, (d_out,), minval=-1., maxval=1.) / jnp.sqrt(hid)
        gamma = jnp.ones((hid,), jnp.float32)
        beta = jnp.zeros((hid,), jnp.float32)
        return x, w1, b1, w2, b2, gamma, beta

    k1, k2 = jax.random.split(key)

    # --- case A: module-sized shapes, resident-weight path ------------------
    x, w1, b1, w2, b2, gamma, beta = make_case(k1, 8, 32, 64, 16)

    # norm=True, f32 weights (tight tolerance).
    y_ref = feedforward_ref(x, w1, b1, w2, b2, gamma, beta, norm=True)
    p_f32 = prepare_ffn_params(w1, b1, w2, b2, gamma, beta, norm=True)
    y = jax.block_until_ready(feedforward_pallas(x, p_f32, norm=True))
    assert y.shape == (8, 16)
    assert jnp.allclose(y, y_ref, atol=1e-4, rtol=1e-4), "norm=True f32 mismatch"

    # norm=False, ragged row count (13 rows -> clipped last row block).
    x13 = jax.random.normal(jax.random.PRNGKey(7), (13, 32), dtype=jnp.float32)
    p_nn = prepare_ffn_params(w1, b1, w2, b2, norm=False)
    y_nn = jax.block_until_ready(feedforward_pallas(x13, p_nn, norm=False))
    y_nn_ref = feedforward_ref(x13, w1, b1, w2, b2, gamma, beta, norm=False)
    assert jnp.allclose(y_nn, y_nn_ref, atol=1e-4, rtol=1e-4), "norm=False mismatch"

    # bf16 weights (f32 accumulation / f32 LayerNorm stats), loose tolerance.
    p_bf16 = prepare_ffn_params(w1, b1, w2, b2, gamma, beta, norm=True,
                                param_dtype=jnp.bfloat16)
    y_bf16 = jax.block_until_ready(feedforward_pallas(x, p_bf16, norm=True))
    assert jnp.allclose(y_bf16.astype(jnp.float32), y_ref, atol=1e-1, rtol=1e-1), \
        "bf16 mismatch vs reference"

    # --- case B: hidden-chunked (norm=False) path, forced chunking ----------
    xb, w1b, b1b, w2b, b2b, gb, bb = make_case(k2, 100, 32, 256, 16)
    y_ref_b = feedforward_ref(xb, w1b, b1b, w2b, b2b, gb, bb, norm=False)
    p_b = prepare_ffn_params(w1b, b1b, w2b, b2b, norm=False)
    y_b = jax.block_until_ready(
        feedforward_pallas(xb, p_b, norm=False, hidden_block=128))
    assert y_b.shape == (100, 16)
    assert jnp.allclose(y_b, y_ref_b, atol=1e-4, rtol=1e-4), "chunked mismatch"

    print("KERNEL_OK")
</pallas_src>

<mosaic_0001>
module attributes {stable_mosaic.version = 11 : i64} {
  func.func @_ffn_resident_kernel(%arg0: i32, %arg1: memref<8x128xf32, #tpu.memory_space<vmem>>, %arg2: memref<128x128xf32, #tpu.memory_space<vmem>>, %arg3: memref<1x128xf32, #tpu.memory_space<vmem>>, %arg4: memref<128x128xf32, #tpu.memory_space<vmem>>, %arg5: memref<1x128xf32, #tpu.memory_space<vmem>>, %arg6: memref<1x128xf32, #tpu.memory_space<vmem>>, %arg7: memref<1x128xf32, #tpu.memory_space<vmem>>, %arg8: memref<8x128xf32, #tpu.memory_space<vmem>>) attributes {dimension_semantics = [#tpu.dimension_semantics<parallel>], iteration_bounds = array<i64: 1>, scalar_prefetch = 0 : i64, scratch_operands = 0 : i64, tpu.core_type = #tpu.core_type<tc>, window_params = [{transform_indices = @transform_0, window_bounds = array<i64: 8, 128>}, {pipeline_mode = #tpu.pipeline_mode<synchronous>, transform_indices = @transform_1, window_bounds = array<i64: 128, 128>}, {pipeline_mode = #tpu.pipeline_mode<synchronous>, transform_indices = @transform_2, window_bounds = array<i64: 1, 128>}, {pipeline_mode = #tpu.pipeline_mode<synchronous>, transform_indices = @transform_3, window_bounds = array<i64: 128, 128>}, {pipeline_mode = #tpu.pipeline_mode<synchronous>, transform_indices = @transform_4, window_bounds = array<i64: 1, 128>}, {pipeline_mode = #tpu.pipeline_mode<synchronous>, transform_indices = @transform_5, window_bounds = array<i64: 1, 128>}, {pipeline_mode = #tpu.pipeline_mode<synchronous>, transform_indices = @transform_6, window_bounds = array<i64: 1, 128>}, {transform_indices = @transform_7, window_bounds = array<i64: 8, 128>}]} {
    %c0 = arith.constant 0 : index
    %c0_0 = arith.constant 0 : index
    %0 = vector.load %arg1[%c0, %c0_0] : memref<8x128xf32, #tpu.memory_space<vmem>>, vector<8x128xf32>
    %c0_1 = arith.constant 0 : index
    %c0_2 = arith.constant 0 : index
    %1 = vector.load %arg2[%c0_1, %c0_2] : memref<128x128xf32, #tpu.memory_space<vmem>>, vector<128x128xf32>
    %cst = arith.constant dense<0.000000e+00> : vector<8x128xf32>
    %2 = tpu.matmul %0, %1, %cst {dimension_numbers = #tpu.dot_dimension_numbers<[1], [0], [0], [1], [0, 0, 1, 1], [], []>} : vector<8x128xf32>, vector<128x128xf32>, vector<8x128xf32> -> vector<8x128xf32>
    %c0_3 = arith.constant 0 : index
    %c0_4 = arith.constant 0 : index
    %3 = vector.load %arg3[%c0_3, %c0_4] : memref<1x128xf32, #tpu.memory_space<vmem>>, vector<1x128xf32>
    %4 = vector.broadcast %3 : vector<1x128xf32> to vector<8x128xf32>
    %5 = arith.addf %2, %4 : vector<8x128xf32>
    %cst_5 = arith.constant dense<0.000000e+00> : vector<8xf32>
    %6 = vector.multi_reduction <add>, %5, %cst_5 [1] : vector<8x128xf32> to vector<8xf32>
    %7 = vector.shape_cast %6 : vector<8xf32> to vector<8x1xf32>
    %cst_6 = arith.constant 1.562500e-02 : f32
    %8 = vector.broadcast %cst_6 : f32 to vector<8x1xf32>
    %9 = arith.mulf %7, %8 : vector<8x1xf32>
    %10 = arith.mulf %5, %5 : vector<8x128xf32>
    %cst_7 = arith.constant dense<0.000000e+00> : vector<8xf32>
    %11 = vector.multi_reduction <add>, %10, %cst_7 [1] : vector<8x128xf32> to vector<8xf32>
    %12 = vector.shape_cast %11 : vector<8xf32> to vector<8x1xf32>
    %cst_8 = arith.constant 1.562500e-02 : f32
    %13 = vector.broadcast %cst_8 : f32 to vector<8x1xf32>
    %14 = arith.mulf %12, %13 : vector<8x1xf32>
    %15 = arith.mulf %9, %9 : vector<8x1xf32>
    %16 = arith.subf %14, %15 : vector<8x1xf32>
    %cst_9 = arith.constant 0.000000e+00 : f32
    %17 = vector.broadcast %cst_9 : f32 to vector<8x1xf32>
    %18 = arith.maximumf %16, %17 : vector<8x1xf32>
    %19 = vector.broadcast %9 : vector<8x1xf32> to vector<8x128xf32>
    %20 = arith.subf %5, %19 : vector<8x128xf32>
    %cst_10 = arith.constant 9.99999974E-6 : f32
    %21 = vector.broadcast %cst_10 : f32 to vector<8x1xf32>
    %22 = arith.addf %18, %21 : vector<8x1xf32>
    %23 = math.rsqrt %22 : vector<8x1xf32>
    %24 = vector.broadcast %23 : vector<8x1xf32> to vector<8x128xf32>
    %25 = arith.mulf %20, %24 : vector<8x128xf32>
    %c0_11 = arith.constant 0 : index
    %c0_12 = arith.constant 0 : index
    %26 = vector.load %arg6[%c0_11, %c0_12] : memref<1x128xf32, #tpu.memory_space<vmem>>, vector<1x128xf32>
    %27 = vector.broadcast %26 : vector<1x128xf32> to vector<8x128xf32>
    %28 = arith.mulf %25, %27 : vector<8x128xf32>
    %c0_13 = arith.constant 0 : index
    %c0_14 = arith.constant 0 : index
    %29 = vector.load %arg7[%c0_13, %c0_14] : memref<1x128xf32, #tpu.memory_space<vmem>>, vector<1x128xf32>
    %30 = vector.broadcast %29 : vector<1x128xf32> to vector<8x128xf32>
    %31 = arith.addf %28, %30 : vector<8x128xf32>
    %cst_15 = arith.constant 0.000000e+00 : f32
    %32 = vector.broadcast %cst_15 : f32 to vector<8x128xf32>
    %33 = arith.maximumf %31, %32 : vector<8x128xf32>
    %c0_16 = arith.constant 0 : index
    %c0_17 = arith.constant 0 : index
    %34 = vector.load %arg4[%c0_16, %c0_17] : memref<128x128xf32, #tpu.memory_space<vmem>>, vector<128x128xf32>
    %cst_18 = arith.constant dense<0.000000e+00> : vector<8x128xf32>
    %35 = tpu.matmul %33, %34, %cst_18 {dimension_numbers = #tpu.dot_dimension_numbers<[1], [0], [0], [1], [0, 0, 1, 1], [], []>} : vector<8x128xf32>, vector<128x128xf32>, vector<8x128xf32> -> vector<8x128xf32>
    %c0_19 = arith.constant 0 : index
    %c0_20 = arith.constant 0 : index
    %36 = vector.load %arg5[%c0_19, %c0_20] : memref<1x128xf32, #tpu.memory_space<vmem>>, vector<1x128xf32>
    %37 = vector.broadcast %36 : vector<1x128xf32> to vector<8x128xf32>
    %38 = arith.addf %35, %37 : vector<8x128xf32>
    %c0_21 = arith.constant 0 : index
    %c0_22 = arith.constant 0 : index
    %39 = vector.load %arg8[%c0_21, %c0_22] : memref<8x128xf32, #tpu.memory_space<vmem>>, vector<8x128xf32>
    tpu.vector_store %arg8[%c0_21, %c0_22], %38 {strides = array<i32>} : memref<8x128xf32, #tpu.memory_space<vmem>>, vector<8x128xf32>,
    return
  }
  func.func @transform_0(%arg0: i32) -> (i32, i32) {
    %c0_i32 = arith.constant 0 : i32
    %c0_i32_0 = arith.constant 0 : i32
    return %arg0, %c0_i32 : i32, i32
  }
  func.func @transform_1(%arg0: i32) -> (i32, i32) {
    %c0_i32 = arith.constant 0 : i32
    %c0_i32_0 = arith.constant 0 : i32
    %c0_i32_1 = arith.constant 0 : i32
    return %c0_i32, %c0_i32_0 : i32, i32
  }
  func.func @transform_2(%arg0: i32) -> (i32, i32) {
    %c0_i32 = arith.constant 0 : i32
    %c0_i32_0 = arith.constant 0 : i32
    %c0_i32_1 = arith.constant 0 : i32
    return %c0_i32, %c0_i32_0 : i32, i32
  }
  func.func @transform_3(%arg0: i32) -> (i32, i32) {
    %c0_i32 = arith.constant 0 : i32
    %c0_i32_0 = arith.constant 0 : i32
    %c0_i32_1 = arith.constant 0 : i32
    return %c0_i32, %c0_i32_0 : i32, i32
  }
  func.func @transform_4(%arg0: i32) -> (i32, i32) {
    %c0_i32 = arith.constant 0 : i32
    %c0_i32_0 = arith.constant 0 : i32
    %c0_i32_1 = arith.constant 0 : i32
    return %c0_i32, %c0_i32_0 : i32, i32
  }
  func.func @transform_5(%arg0: i32) -> (i32, i32) {
    %c0_i32 = arith.constant 0 : i32
    %c0_i32_0 = arith.constant 0 : i32
    %c0_i32_1 = arith.constant 0 : i32
    return %c0_i32, %c0_i32_0 : i32, i32
  }
  func.func @transform_6(%arg0: i32) -> (i32, i32) {
    %c0_i32 = arith.constant 0 : i32
    %c0_i32_0 = arith.constant 0 : i32
    %c0_i32_1 = arith.constant 0 : i32
    return %c0_i32, %c0_i32_0 : i32, i32
  }
  func.func @transform_7(%arg0: i32) -> (i32, i32) {
    %c0_i32 = arith.constant 0 : i32
    %c0_i32_0 = arith.constant 0 : i32
    return %arg0, %c0_i32 : i32, i32
  }
}

module attributes {stable_mosaic.version = 11 : i64} {
  func.func @_ffn_resident_kernel(%arg0: i32, %arg1: memref<8x128xf32, #tpu.memory_space<vmem>>, %arg2: memref<128x128xf32, #tpu.memory_space<vmem>>, %arg3: memref<1x128xf32, #tpu.memory_space<vmem>>, %arg4: memref<128x128xf32, #tpu.memory_space<vmem>>, %arg5: memref<1x128xf32, #tpu.memory_space<vmem>>, %arg6: memref<1x128xf32, #tpu.memory_space<vmem>>, %arg7: memref<1x128xf32, #tpu.memory_space<vmem>>, %arg8: memref<8x128xf32, #tpu.memory_space<vmem>>) attributes {dimension_semantics = [#tpu.dimension_semantics<parallel>], iteration_bounds = array<i64: 1>, scalar_prefetch = 0 : i64, scratch_operands = 0 : i64, tpu.core_type = #tpu.core_type<tc>, window_params = [{transform_indices = @transform_0, window_bounds = array<i64: 8, 128>}, {pipeline_mode = #tpu.pipeline_mode<synchronous>, transform_indices = @transform_1, window_bounds = array<i64: 128, 128>}, {pipeline_mode = #tpu.pipeline_mode<synchronous>, transform_indices = @transform_2, window_bounds = array<i64: 1, 128>}, {pipeline_mode = #tpu.pipeline_mode<synchronous>, transform_indices = @transform_3, window_bounds = array<i64: 128, 128>}, {pipeline_mode = #tpu.pipeline_mode<synchronous>, transform_indices = @transform_4, window_bounds = array<i64: 1, 128>}, {pipeline_mode = #tpu.pipeline_mode<synchronous>, transform_indices = @transform_5, window_bounds = array<i64: 1, 128>}, {pipeline_mode = #tpu.pipeline_mode<synchronous>, transform_indices = @transform_6, window_bounds = array<i64: 1, 128>}, {transform_indices = @transform_7, window_bounds = array<i64: 8, 128>}]} {
    %c0 = arith.constant 0 : index
    %c0_0 = arith.constant 0 : index
    %0 = vector.load %arg1[%c0, %c0_0] : memref<8x128xf32, #tpu.memory_space<vmem>>, vector<8x128xf32>
    %c0_1 = arith.constant 0 : index
    %c0_2 = arith.constant 0 : index
    %1 = vector.load %arg2[%c0_1, %c0_2] : memref<128x128xf32, #tpu.memory_space<vmem>>, vector<128x128xf32>
    %cst = arith.constant dense<0.000000e+00> : vector<8x128xf32>
    %2 = tpu.matmul %0, %1, %cst {dimension_numbers = #tpu.dot_dimension_numbers<[1], [0], [0], [1], [0, 0, 1, 1], [], []>} : vector<8x128xf32>, vector<128x128xf32>, vector<8x128xf32> -> vector<8x128xf32>
    %c0_3 = arith.constant 0 : index
    %c0_4 = arith.constant 0 : index
    %3 = vector.load %arg3[%c0_3, %c0_4] : memref<1x128xf32, #tpu.memory_space<vmem>>, vector<1x128xf32>
    %4 = vector.broadcast %3 : vector<1x128xf32> to vector<8x128xf32>
    %5 = arith.addf %2, %4 : vector<8x128xf32>
    %cst_5 = arith.constant dense<0.000000e+00> : vector<8xf32>
    %6 = vector.multi_reduction <add>, %5, %cst_5 [1] : vector<8x128xf32> to vector<8xf32>
    %7 = vector.shape_cast %6 : vector<8xf32> to vector<8x1xf32>
    %cst_6 = arith.constant 1.562500e-02 : f32
    %8 = vector.broadcast %cst_6 : f32 to vector<8x1xf32>
    %9 = arith.mulf %7, %8 : vector<8x1xf32>
    %10 = arith.mulf %5, %5 : vector<8x128xf32>
    %cst_7 = arith.constant dense<0.000000e+00> : vector<8xf32>
    %11 = vector.multi_reduction <add>, %10, %cst_7 [1] : vector<8x128xf32> to vector<8xf32>
    %12 = vector.shape_cast %11 : vector<8xf32> to vector<8x1xf32>
    %cst_8 = arith.constant 1.562500e-02 : f32
    %13 = vector.broadcast %cst_8 : f32 to vector<8x1xf32>
    %14 = arith.mulf %12, %13 : vector<8x1xf32>
    %15 = arith.mulf %9, %9 : vector<8x1xf32>
    %16 = arith.subf %14, %15 : vector<8x1xf32>
    %cst_9 = arith.constant 0.000000e+00 : f32
    %17 = vector.broadcast %cst_9 : f32 to vector<8x1xf32>
    %18 = arith.maximumf %16, %17 : vector<8x1xf32>
    %19 = vector.broadcast %9 : vector<8x1xf32> to vector<8x128xf32>
    %20 = arith.subf %5, %19 : vector<8x128xf32>
    %cst_10 = arith.constant 9.99999974E-6 : f32
    %21 = vector.broadcast %cst_10 : f32 to vector<8x1xf32>
    %22 = arith.addf %18, %21 : vector<8x1xf32>
    %23 = math.rsqrt %22 : vector<8x1xf32>
    %24 = vector.broadcast %23 : vector<8x1xf32> to vector<8x128xf32>
    %25 = arith.mulf %20, %24 : vector<8x128xf32>
    %c0_11 = arith.constant 0 : index
    %c0_12 = arith.constant 0 : index
    %26 = vector.load %arg6[%c0_11, %c0_12] : memref<1x128xf32, #tpu.memory_space<vmem>>, vector<1x128xf32>
    %27 = vector.broadcast %26 : vector<1x128xf32> to vector<8x128xf32>
    %28 = arith.mulf %25, %27 : vector<8x128xf32>
    %c0_13 = arith.constant 0 : index
    %c0_14 = arith.constant 0 : index
    %29 = vector.load %arg7[%c0_13, %c0_14] : memref<1x128xf32, #tpu.memory_space<vmem>>, vector<1x128xf32>
    %30 = vector.broadcast %29 : vector<1x128xf32> to vector<8x128xf32>
    %31 = arith.addf %28, %30 : vector<8x128xf32>
    %cst_15 = arith.constant 0.000000e+00 : f32
    %32 = vector.broadcast %cst_15 : f32 to vector<8x128xf32>
    %33 = arith.maximumf %31, %32 : vector<8x128xf32>
    %c0_16 = arith.constant 0 : index
    %c0_17 = arith.constant 0 : index
    %34 = vector.load %arg4[%c0_16, %c0_17] : memref<128x128xf32, #tpu.memory_space<vmem>>, vector<128x128xf32>
    %cst_18 = arith.constant dense<0.000000e+00> : vector<8x128xf32>
    %35 = tpu.matmul %33, %34, %cst_18 {dimension_numbers = #tpu.dot_dimension_numbers<[1], [0], [0], [1], [0, 0, 1, 1], [], []>} : vector<8x128xf32>, vector<128x128xf32>, vector<8x128xf32> -> vector<8x128xf32>
    %c0_19 = arith.constant 0 : index
    %c0_20 = arith.constant 0 : index
    %36 = vector.load %arg5[%c0_19, %c0_20] : memref<1x128xf32, #tpu.memory_space<vmem>>, vector<1x128xf32>
    %37 = vector.broadcast %36 : vector<1x128xf32> to vector<8x128xf32>
    %38 = arith.addf %35, %37 : vector<8x128xf32>
    %c0_21 = arith.constant 0 : index
    %c0_22 = arith.constant 0 : index
    %39 = vector.load %arg8[%c0_21, %c0_22] : memref<8x128xf32, #tpu.memory_space<vmem>>, vector<8x128xf32>
    tpu.vector_store %arg8[%c0_21, %c0_22], %38 {strides = array<i32>} : memref<8x128xf32, #tpu.memory_space<vmem>>, vector<8x128xf32>,
    return
  }
  func.func @transform_0(%arg0: i32) -> (i32, i32) {
    %c0_i32 = arith.constant 0 : i32
    %c0_i32_0 = arith.constant 0 : i32
    return %arg0, %c0_i32 : i32, i32
  }
  func.func @transform_1(%arg0: i32) -> (i32, i32) {
    %c0_i32 = arith.constant 0 : i32
    %c0_i32_0 = arith.constant 0 : i32
    %c0_i32_1 = arith.constant 0 : i32
    return %c0_i32, %c0_i32_0 : i32, i32
  }
  func.func @transform_2(%arg0: i32) -> (i32, i32) {
    %c0_i32 = arith.constant 0 : i32
    %c0_i32_0 = arith.constant 0 : i32
    %c0_i32_1 = arith.constant 0 : i32
    return %c0_i32, %c0_i32_0 : i32, i32
  }
  func.func @transform_3(%arg0: i32) -> (i32, i32) {
    %c0_i32 = arith.constant 0 : i32
    %c0_i32_0 = arith.constant 0 : i32
    %c0_i32_1 = arith.constant 0 : i32
    return %c0_i32, %c0_i32_0 : i32, i32
  }
  func.func @transform_4(%arg0: i32) -> (i32, i32) {
    %c0_i32 = arith.constant 0 : i32
    %c0_i32_0 = arith.constant 0 : i32
    %c0_i32_1 = arith.constant 0 : i32
    return %c0_i32, %c0_i32_0 : i32, i32
  }
  func.func @transform_5(%arg0: i32) -> (i32, i32) {
    %c0_i32 = arith.constant 0 : i32
    %c0_i32_0 = arith.constant 0 : i32
    %c0_i32_1 = arith.constant 0 : i32
    return %c0_i32, %c0_i32_0 : i32, i32
  }
  func.func @transform_6(%arg0: i32) -> (i32, i32) {
    %c0_i32 = arith.constant 0 : i32
    %c0_i32_0 = arith.constant 0 : i32
    %c0_i32_1 = arith.constant 0 : i32
    return %c0_i32, %c0_i32_0 : i32, i32
  }
  func.func @transform_7(%arg0: i32) -> (i32, i32) {
    %c0_i32 = arith.constant 0 : i32
    %c0_i32_0 = arith.constant 0 : i32
    return %arg0, %c0_i32 : i32, i32
  }
}

</mosaic_0001>

<llo_original>
// kernel: tpu_custom_call.1
$region0: #{tpu_custom_call.1}
  #allocation0 [shape = 'u32[]', space=smem, size = 0x4, offset = 0x4, fixed_abs, tag = 'smem constant byte address 0x4 - core index']
  #allocation1 [shape = 'u32[144,128]{1,0:T(1,128)}', space=vmem, size = 0x12000, scoped, tag = 'internal scratch']
  %s0 = inlined_call_operand.hbm [shape: f32[8,128], index: 0, kind: input, shape index: {}]
  %s1 = inlined_call_operand.hbm [shape: f32[128,128], index: 1, kind: input, shape index: {}]
  %s2 = inlined_call_operand.vmem [shape: f32[1,128], index: 2, kind: input, shape index: {}]
  %s3 = inlined_call_operand.hbm [shape: f32[128,128], index: 3, kind: input, shape index: {}]
  %s4 = inlined_call_operand.vmem [shape: f32[1,128], index: 4, kind: input, shape index: {}]
  %s5 = inlined_call_operand.vmem [shape: f32[1,128], index: 5, kind: input, shape index: {}]
  %s6 = inlined_call_operand.vmem [shape: f32[1,128], index: 6, kind: input, shape index: {}]
  %s7 = inlined_call_operand.hbm [shape: f32[8,128], index: 7, kind: output, shape index: {}]
  %s8 = sld [smem:[#allocation0]]
  $region50: #{tpu_custom_call.1} parent=0
    _
  %s10 = ssub.s32 1, %s8
  %s11 = scalar_select 0, %s10, %s8
  $region1: #{tpu_custom_call.1} parent=0
    #allocation2 [shape = 'u8[4096]{0}', space=vmem, size = 0x1000, scoped, tag = 'input window, operand 0, single buffered']
    #allocation3 [shape = 's32[1]{0}', space=sflag, size = 0x4, scoped, tag = 'scoped memory for tpu_custom_call.1']
    #allocation4 [shape = 's32[1]{0}', space=sflag, size = 0x4, scoped, tag = 'scoped memory for tpu_custom_call.1']
    #allocation5 [shape = 'u8[65536]{0}', space=vmem, size = 0x10000, scoped, tag = 'input window, operand 1, single buffered']
    #allocation6 [shape = 's32[1]{0}', space=sflag, size = 0x4, scoped, tag = 'scoped memory for tpu_custom_call.1']
    #allocation7 [shape = 'u8[65536]{0}', space=vmem, size = 0x10000, scoped, tag = 'input window, operand 3, single buffered']
    #allocation8 [shape = 'u8[4096]{0}', space=vmem, size = 0x1000, scoped, tag = 'output window, operand 0, single buffered']
    %12 = vsyncpa [#allocation3], 0
    %13 = vsyncpa [#allocation6], 0
    %14 = vsyncpa [#allocation4], 0
    // Predicated region
    $region2: #{tpu_custom_call.1} parent=1 // pred_check
      _
    $region3: #{tpu_custom_call.1} parent=1 // pred_check_branch
      %16 = sbr.rel (0) target = $region5
    $region4: #{tpu_custom_call.1} parent=1 // pred_region
      %s18 = ssub.s32 128, 128
      %19 = vsyncadd [#allocation3], %s18
      %s21 = sshll.u32 [#allocation2], 4
      %s22 = int_to_ptr.vmem [resolvable:$true] %s21
      %24 = dma.hbm_to_vmem [thread:$0]  %s0, 128, %s22, [#allocation3]
    $region5: #{tpu_custom_call.1} parent=1 // pred_fallthru
      _
    // Predicated region
    $region6: #{tpu_custom_call.1} parent=1 // pred_check
      _
    $region7: #{tpu_custom_call.1} parent=1 // pred_check_branch
      %26 = sbr.rel (0) target = $region9
    $region8: #{tpu_custom_call.1} parent=1 // pred_region
      %s28 = ssub.s32 2048, 2048
      %29 = vsyncadd [#allocation6], %s28
      %s30 = sshll.u32 [#allocation5], 4
      %s31 = int_to_ptr.vmem [resolvable:$true] %s30
      %36 = dma.hbm_to_vmem [thread:$0]  %s1, 2048, %s31, [#allocation6], 128, 128, 8
    $region9: #{tpu_custom_call.1} parent=1 // pred_fallthru
      _
    // Predicated region
    $region10: #{tpu_custom_call.1} parent=1 // pred_check
      _
    $region11: #{tpu_custom_call.1} parent=1 // pred_check_branch
      %38 = sbr.rel (0) target = $region13
    $region12: #{tpu_custom_call.1} parent=1 // pred_region
      _
    $region13: #{tpu_custom_call.1} parent=1 // pred_fallthru
      _
    // Predicated region
    $region14: #{tpu_custom_call.1} parent=1 // pred_check
      _
    $region15: #{tpu_custom_call.1} parent=1 // pred_check_branch
      %40 = sbr.rel (0) target = $region17
    $region16: #{tpu_custom_call.1} parent=1 // pred_region
      %s42 = ssub.s32 2048, 2048
      %43 = vsyncadd [#allocation6], %s42
      %s44 = sshll.u32 [#allocation7], 4
      %s45 = int_to_ptr.vmem [resolvable:$true] %s44
      %50 = dma.hbm_to_vmem [thread:$0]  %s3, 2048, %s45, [#allocation6], 128, 128, 8
    $region17: #{tpu_custom_call.1} parent=1 // pred_fallthru
      _
    // Predicated region
    $region18: #{tpu_custom_call.1} parent=1 // pred_check
      _
    $region19: #{tpu_custom_call.1} parent=1 // pred_check_branch
      %52 = sbr.rel (0) target = $region21
    $region20: #{tpu_custom_call.1} parent=1 // pred_region
      _
    $region21: #{tpu_custom_call.1} parent=1 // pred_fallthru
      _
    // Predicated region
    $region22: #{tpu_custom_call.1} parent=1 // pred_check
      _
    $region23: #{tpu_custom_call.1} parent=1 // pred_check_branch
      %54 = sbr.rel (0) target = $region25
    $region24: #{tpu_custom_call.1} parent=1 // pred_region
      _
    $region25: #{tpu_custom_call.1} parent=1 // pred_fallthru
      _
    // Predicated region
    $region26: #{tpu_custom_call.1} parent=1 // pred_check
      _
    $region27: #{tpu_custom_call.1} parent=1 // pred_check_branch
      %56 = sbr.rel (0) target = $region29
    $region28: #{tpu_custom_call.1} parent=1 // pred_region
      _
    $region29: #{tpu_custom_call.1} parent=1 // pred_fallthru
      _
    // Predicated region
    $region30: #{tpu_custom_call.1} parent=1 // pred_check
      _
    $region31: #{tpu_custom_call.1} parent=1 // pred_check_branch
      %58 = sbr.rel (0) target = $region33
    $region32: #{tpu_custom_call.1} parent=1 // pred_region
      %59 = dma.done [#allocation3], 128
    $region33: #{tpu_custom_call.1} parent=1 // pred_fallthru
      _
    // Predicated region
    $region34: #{tpu_custom_call.1} parent=1 // pred_check
      _
    $region35: #{tpu_custom_call.1} parent=1 // pred_check_branch
      %61 = sbr.rel (0) target = $region37
    $region36: #{tpu_custom_call.1} parent=1 // pred_region
      %62 = dma.done [#allocation6], 2048
    $region37: #{tpu_custom_call.1} parent=1 // pred_fallthru
      _
    // Predicated region
    $region38: #{tpu_custom_call.1} parent=1 // pred_check
      _
    $region39: #{tpu_custom_call.1} parent=1 // pred_check_branch
      %64 = sbr.rel (0) target = $region41
    $region40: #{tpu_custom_call.1} parent=1 // pred_region
      %65 = dma.done [#allocation6], 2048
    $region41: #{tpu_custom_call.1} parent=1 // pred_fallthru
      _
    %v66 = vld [vmem:[#allocation2] sm:$0xff]
    %v67 = vld [vmem:[#allocation5] sm:$0xff]
    %v68 = vld [vmem:[#allocation5 + $0x8] sm:$0xff]
    %v69 = vld [vmem:[#allocation5 + $0x10] sm:$0xff]
    %v70 = vld [vmem:[#allocation5 + $0x18] sm:$0xff]
    %v71 = vld [vmem:[#allocation5 + $0x20] sm:$0xff]
    %v72 = vld [vmem:[#allocation5 + $0x28] sm:$0xff]
    %v73 = vld [vmem:[#allocation5 + $0x30] sm:$0xff]
    %v74 = vld [vmem:[#allocation5 + $0x38] sm:$0xff]
    %v75 = vld [vmem:[#allocation5 + $0x40] sm:$0xff]
    %v76 = vld [vmem:[#allocation5 + $0x48] sm:$0xff]
    %v77 = vld [vmem:[#allocation5 + $0x50] sm:$0xff]
    %v78 = vld [vmem:[#allocation5 + $0x58] sm:$0xff]
    %v79 = vld [vmem:[#allocation5 + $0x60] sm:$0xff]
    %v80 = vld [vmem:[#allocation5 + $0x68] sm:$0xff]
    %v81 = vld [vmem:[#allocation5 + $0x70] sm:$0xff]
    %v82 = vld [vmem:[#allocation5 + $0x78] sm:$0xff]
    %v83 = vld [vmem:[%s2] sm:$0x1]
    %v85 = vlaneseq
    %v86 = vshrl.u32 %v85, 7
    %v87 = vsub.s32 0, %v86
    %v88 = vrot.slane %v83, %v87
    %90 = vmatprep.subr.mxu0 0.0
    %91 = vmatpush1.msra.mxu0 %v67
    %92 = vmatprep.subr.mxu0 0.0
    %93 = vmatpush1.msra.mxu0 %v68
    %94 = vmatprep.subr.mxu0 0.0
    %95 = vmatpush1.msra.mxu0 %v69
    %96 = vmatprep.subr.mxu0 0.0
    %97 = vmatpush1.msra.mxu0 %v70
    %98 = vmatprep.subr.mxu0 0.0
    %99 = vmatpush1.msra.mxu0 %v71
    %100 = vmatprep.subr.mxu0 0.0
    %101 = vmatpush1.msra.mxu0 %v72
    %102 = vmatprep.subr.mxu0 0.0
    %103 = vmatpush1.msra.mxu0 %v73
    %104 = vmatprep.subr.mxu0 0.0
    %105 = vmatpush1.msra.mxu0 %v74
    %106 = vmatprep.subr.mxu0 0.0
    %107 = vmatpush1.msra.mxu0 %v75
    %108 = vmatprep.subr.mxu0 0.0
    %109 = vmatpush1.msra.mxu0 %v76
    %110 = vmatprep.subr.mxu0 0.0
    %111 = vmatpush1.msra.mxu0 %v77
    %112 = vmatprep.subr.mxu0 0.0
    %113 = vmatpush1.msra.mxu0 %v78
    %114 = vmatprep.subr.mxu0 0.0
    %115 = vmatpush1.msra.mxu0 %v79
    %116 = vmatprep.subr.mxu0 0.0
    %117 = vmatpush1.msra.mxu0 %v80
    %118 = vmatprep.subr.mxu0 0.0
    %119 = vmatpush1.msra.mxu0 %v81
    %120 = vmatprep.subr.mxu0 0.0
    %121 = vmatpush1.msra.mxu0 %v82
    %122 = vmatprep.subr.mxu0 0.0
    %123 = vmatpush1.msra.mxu0 0.0
    %124 = vmatprep.subr.mxu0 0.0
    %125 = vmatpush1.msra.mxu0 0.0
    %126 = vmatprep.subr.mxu0 0.0
    %127 = vmatpush1.msra.mxu0 0.0
    %128 = vmatprep.subr.mxu0 0.0
    %129 = vmatpush1.msra.mxu0 0.0
    %130 = vmatprep.subr.mxu0 0.0
    %131 = vmatpush1.msra.mxu0 0.0
    %132 = vmatprep.subr.mxu0 0.0
    %133 = vmatpush1.msra.mxu0 0.0
    %134 = vmatprep.subr.mxu0 0.0
    %135 = vmatpush1.msra.mxu0 0.0
    %136 = vmatprep.subr.mxu0 0.0
    %137 = vmatpush1.msra.mxu0 0.0
    %138 = vmatprep.subr.mxu0 0.0
    %139 = vmatpush1.msra.mxu0 0.0
    %140 = vmatprep.subr.mxu0 0.0
    %141 = vmatpush1.msra.mxu0 0.0
    %142 = vmatprep.subr.mxu0 0.0
    %143 = vmatpush1.msra.mxu0 0.0
    %144 = vmatprep.subr.mxu0 0.0
    %145 = vmatpush1.msra.mxu0 0.0
    %146 = vmatprep.subr.mxu0 0.0
    %147 = vmatpush1.msra.mxu0 0.0
    %148 = vmatprep.subr.mxu0 0.0
    %149 = vmatpush1.msra.mxu0 0.0
    %150 = vmatprep.subr.mxu0 0.0
    %151 = vmatpush1.msra.mxu0 0.0
    %152 = vmatprep.subr.mxu0 0.0
    %153 = vmatpush1.msra.mxu0 0.0
    %154 = vmatprep.mubr.f32.mxu0 0.0
    %155 = vmatmul.mubr.f32.gmra.mrb[0].mxu0 %v66
    %v156 = vpop.f32.mrb[0].mxu0
    %v157 = vadd.f32 %v88, %v156
    %v158 = vpop.f32.mrb[0].mxu0
    %159 = vdwg.mxu0
    %160 = vadd.xlane.f32.xlu0 %v157
    %v161 = vpop.xlane.xlu0 %160
    %v162 = vmul.f32 %v161, 0.015625
    %v163 = vmul.f32 %v157, %v157
    %164 = vadd.xlane.f32.xlu0 %v163
    %v165 = vpop.xlane.xlu0 %164
    %v166 = vmul.f32 %v165, 0.015625
    %v167 = vmul.f32 %v162, %v162
    %v168 = vsub.f32 %v166, %v167
    %v169 = vmax.f32 %v168, 0.0
    %v170 = vsub.f32 %v157, %v162
    %v171 = vadd.f32 %v169, 1e-05
    %v172 = vrsqrt.pop %v171
    %v173 = vmul.f32 %v170, %v172
    %v174 = vld [vmem:[%s5] sm:$0x1]
    %v176 = vlaneseq
    %v177 = vshrl.u32 %v176, 7
    %v178 = vsub.s32 0, %v177
    %v179 = vrot.slane %v174, %v178
    %v181 = vmul.f32 %v173, %v179
    %v182 = vld [vmem:[%s6] sm:$0x1]
    %v184 = vlaneseq
    %v185 = vshrl.u32 %v184, 7
    %v186 = vsub.s32 0, %v185
    %v187 = vrot.slane %v182, %v186
    %v189 = vadd.f32 %v181, %v187
    %v190 = vmax.f32 %v189, 0.0
    %v191 = vld [vmem:[#allocation7] sm:$0xff]
    %v192 = vld [vmem:[#allocation7 + $0x8] sm:$0xff]
    %v193 = vld [vmem:[#allocation7 + $0x10] sm:$0xff]
    %v194 = vld [vmem:[#allocation7 + $0x18] sm:$0xff]
    %v195 = vld [vmem:[#allocation7 + $0x20] sm:$0xff]
    %v196 = vld [vmem:[#allocation7 + $0x28] sm:$0xff]
    %v197 = vld [vmem:[#allocation7 + $0x30] sm:$0xff]
    %v198 = vld [vmem:[#allocation7 + $0x38] sm:$0xff]
    %v199 = vld [vmem:[#allocation7 + $0x40] sm:$0xff]
    %v200 = vld [vmem:[#allocation7 + $0x48] sm:$0xff]
    %v201 = vld [vmem:[#allocation7 + $0x50] sm:$0xff]
    %v202 = vld [vmem:[#allocation7 + $0x58] sm:$0xff]
    %v203 = vld [vmem:[#allocation7 + $0x60] sm:$0xff]
    %v204 = vld [vmem:[#allocation7 + $0x68] sm:$0xff]
    %v205 = vld [vmem:[#allocation7 + $0x70] sm:$0xff]
    %v206 = vld [vmem:[#allocation7 + $0x78] sm:$0xff]
    %v207 = vld [vmem:[%s4] sm:$0x1]
    %v209 = vlaneseq
    %v210 = vshrl.u32 %v209, 7
    %v211 = vsub.s32 0, %v210
    %v212 = vrot.slane %v207, %v211
    %214 = vmatprep.subr.mxu0 0.0
    %215 = vmatpush1.msra.mxu0 %v191
    %216 = vmatprep.subr.mxu0 0.0
    %217 = vmatpush1.msra.mxu0 %v192
    %218 = vmatprep.subr.mxu0 0.0
    %219 = vmatpush1.msra.mxu0 %v193
    %220 = vmatprep.subr.mxu0 0.0
    %221 = vmatpush1.msra.mxu0 %v194
    %222 = vmatprep.subr.mxu0 0.0
    %223 = vmatpush1.msra.mxu0 %v195
    %224 = vmatprep.subr.mxu0 0.0
    %225 = vmatpush1.msra.mxu0 %v196
    %226 = vmatprep.subr.mxu0 0.0
    %227 = vmatpush1.msra.mxu0 %v197
    %228 = vmatprep.subr.mxu0 0.0
    %229 = vmatpush1.msra.mxu0 %v198
    %230 = vmatprep.subr.mxu0 0.0
    %231 = vmatpush1.msra.mxu0 %v199
    %232 = vmatprep.subr.mxu0 0.0
    %233 = vmatpush1.msra.mxu0 %v200
    %234 = vmatprep.subr.mxu0 0.0
    %235 = vmatpush1.msra.mxu0 %v201
    %236 = vmatprep.subr.mxu0 0.0
    %237 = vmatpush1.msra.mxu0 %v202
    %238 = vmatprep.subr.mxu0 0.0
    %239 = vmatpush1.msra.mxu0 %v203
    %240 = vmatprep.subr.mxu0 0.0
    %241 = vmatpush1.msra.mxu0 %v204
    %242 = vmatprep.subr.mxu0 0.0
    %243 = vmatpush1.msra.mxu0 %v205
    %244 = vmatprep.subr.mxu0 0.0
    %245 = vmatpush1.msra.mxu0 %v206
    %246 = vmatprep.subr.mxu0 0.0
    %247 = vmatpush1.msra.mxu0 0.0
    %248 = vmatprep.subr.mxu0 0.0
    %249 = vmatpush1.msra.mxu0 0.0
    %250 = vmatprep.subr.mxu0 0.0
    %251 = vmatpush1.msra.mxu0 0.0
    %252 = vmatprep.subr.mxu0 0.0
    %253 = vmatpush1.msra.mxu0 0.0
    %254 = vmatprep.subr.mxu0 0.0
    %255 = vmatpush1.msra.mxu0 0.0
    %256 = vmatprep.subr.mxu0 0.0
    %257 = vmatpush1.msra.mxu0 0.0
    %258 = vmatprep.subr.mxu0 0.0
    %259 = vmatpush1.msra.mxu0 0.0
    %260 = vmatprep.subr.mxu0 0.0
    %261 = vmatpush1.msra.mxu0 0.0
    %262 = vmatprep.subr.mxu0 0.0
    %263 = vmatpush1.msra.mxu0 0.0
    %264 = vmatprep.subr.mxu0 0.0
    %265 = vmatpush1.msra.mxu0 0.0
    %266 = vmatprep.subr.mxu0 0.0
    %267 = vmatpush1.msra.mxu0 0.0
    %268 = vmatprep.subr.mxu0 0.0
    %269 = vmatpush1.msra.mxu0 0.0
    %270 = vmatprep.subr.mxu0 0.0
    %271 = vmatpush1.msra.mxu0 0.0
    %272 = vmatprep.subr.mxu0 0.0
    %273 = vmatpush1.msra.mxu0 0.0
    %274 = vmatprep.subr.mxu0 0.0
    %275 = vmatpush1.msra.mxu0 0.0
    %276 = vmatprep.subr.mxu0 0.0
    %277 = vmatpush1.msra.mxu0 0.0
    %278 = vmatprep.mubr.f32.mxu0 0.0
    %279 = vmatmul.mubr.f32.gmra.mrb[0].mxu0 %v190
    %v280 = vpop.f32.mrb[0].mxu0
    %v281 = vadd.f32 %v212, %v280
    %v282 = vpop.f32.mrb[0].mxu0
    %283 = vdwg.mxu0
    %284 = vst [vmem:[#allocation8] sm:$0xff] %v281
    // Predicated region
    $region42: #{tpu_custom_call.1} parent=1 // pred_check
      _
    $region43: #{tpu_custom_call.1} parent=1 // pred_check_branch
      %286 = sbr.rel (0) target = $region45
    $region44: #{tpu_custom_call.1} parent=1 // pred_region
      %s288 = ssub.s32 128, 128
      %289 = vsyncadd [#allocation4], %s288
      %s291 = sshll.u32 [#allocation8], 4
      %s292 = int_to_ptr.vmem [resolvable:$true] %s291
      %294 = dma.vmem_to_hbm [thread:$0]  %s292, 128, %s7, [#allocation4]
    $region45: #{tpu_custom_call.1} parent=1 // pred_fallthru
      _
    // Predicated region
    $region46: #{tpu_custom_call.1} parent=1 // pred_check
      _
    $region47: #{tpu_custom_call.1} parent=1 // pred_check_branch
      %296 = sbr.rel (0) target = $region49
    $region48: #{tpu_custom_call.1} parent=1 // pred_region
      %297 = dma.done [#allocation4], 128
    $region49: #{tpu_custom_call.1} parent=1 // pred_fallthru
      _
    %298 = vsyncpa [#allocation3], 1
    %299 = vsyncpa [#allocation6], 1
    %300 = vsyncpa [#allocation4], 1

// kernel: tpu_custom_call.1
$region0: #{tpu_custom_call.1}
  #allocation0 [shape = 'u32[]', space=smem, size = 0x4, offset = 0x4, fixed_abs, tag = 'smem constant byte address 0x4 - core index']
  #allocation1 [shape = 'u32[144,128]{1,0:T(1,128)}', space=vmem, size = 0x12000, scoped, tag = 'internal scratch']
  %s0 = inlined_call_operand.hbm [shape: f32[8,128], index: 0, kind: input, shape index: {}]
  %s1 = inlined_call_operand.hbm [shape: f32[128,128], index: 1, kind: input, shape index: {}]
  %s2 = inlined_call_operand.vmem [shape: f32[1,128], index: 2, kind: input, shape index: {}]
  %s3 = inlined_call_operand.hbm [shape: f32[128,128], index: 3, kind: input, shape index: {}]
  %s4 = inlined_call_operand.vmem [shape: f32[1,128], index: 4, kind: input, shape index: {}]
  %s5 = inlined_call_operand.vmem [shape: f32[1,128], index: 5, kind: input, shape index: {}]
  %s6 = inlined_call_operand.vmem [shape: f32[1,128], index: 6, kind: input, shape index: {}]
  %s7 = inlined_call_operand.hbm [shape: f32[8,128], index: 7, kind: output, shape index: {}]
  %s8 = sld [smem:[#allocation0]]
  $region50: #{tpu_custom_call.1} parent=0
    _
  %s10 = ssub.s32 1, %s8
  %s11 = scalar_select 0, %s10, %s8
  $region1: #{tpu_custom_call.1} parent=0
    #allocation2 [shape = 'u8[4096]{0}', space=vmem, size = 0x1000, scoped, tag = 'input window, operand 0, single buffered']
    #allocation3 [shape = 's32[1]{0}', space=sflag, size = 0x4, scoped, tag = 'scoped memory for tpu_custom_call.1']
    #allocation4 [shape = 's32[1]{0}', space=sflag, size = 0x4, scoped, tag = 'scoped memory for tpu_custom_call.1']
    #allocation5 [shape = 'u8[65536]{0}', space=vmem, size = 0x10000, scoped, tag = 'input window, operand 1, single buffered']
    #allocation6 [shape = 's32[1]{0}', space=sflag, size = 0x4, scoped, tag = 'scoped memory for tpu_custom_call.1']
    #allocation7 [shape = 'u8[65536]{0}', space=vmem, size = 0x10000, scoped, tag = 'input window, operand 3, single buffered']
    #allocation8 [shape = 'u8[4096]{0}', space=vmem, size = 0x1000, scoped, tag = 'output window, operand 0, single buffered']
    %12 = vsyncpa [#allocation3], 0
    %13 = vsyncpa [#allocation6], 0
    %14 = vsyncpa [#allocation4], 0
    // Predicated region
    $region2: #{tpu_custom_call.1} parent=1 // pred_check
      _
    $region3: #{tpu_custom_call.1} parent=1 // pred_check_branch
      %16 = sbr.rel (0) target = $region5
    $region4: #{tpu_custom_call.1} parent=1 // pred_region
      %s18 = ssub.s32 128, 128
      %19 = vsyncadd [#allocation3], %s18
      %s21 = sshll.u32 [#allocation2], 4
      %s22 = int_to_ptr.vmem [resolvable:$true] %s21
      %24 = dma.hbm_to_vmem [thread:$0]  %s0, 128, %s22, [#allocation3]
    $region5: #{tpu_custom_call.1} parent=1 // pred_fallthru
      _
    // Predicated region
    $region6: #{tpu_custom_call.1} parent=1 // pred_check
      _
    $region7: #{tpu_custom_call.1} parent=1 // pred_check_branch
      %26 = sbr.rel (0) target = $region9
    $region8: #{tpu_custom_call.1} parent=1 // pred_region
      %s28 = ssub.s32 2048, 2048
      %29 = vsyncadd [#allocation6], %s28
      %s30 = sshll.u32 [#allocation5], 4
      %s31 = int_to_ptr.vmem [resolvable:$true] %s30
      %36 = dma.hbm_to_vmem [thread:$0]  %s1, 2048, %s31, [#allocation6], 128, 128, 8
    $region9: #{tpu_custom_call.1} parent=1 // pred_fallthru
      _
    // Predicated region
    $region10: #{tpu_custom_call.1} parent=1 // pred_check
      _
    $region11: #{tpu_custom_call.1} parent=1 // pred_check_branch
      %38 = sbr.rel (0) target = $region13
    $region12: #{tpu_custom_call.1} parent=1 // pred_region
      _
    $region13: #{tpu_custom_call.1} parent=1 // pred_fallthru
      _
    // Predicated region
    $region14: #{tpu_custom_call.1} parent=1 // pred_check
      _
    $region15: #{tpu_custom_call.1} parent=1 // pred_check_branch
      %40 = sbr.rel (0) target = $region17
    $region16: #{tpu_custom_call.1} parent=1 // pred_region
      %s42 = ssub.s32 2048, 2048
      %43 = vsyncadd [#allocation6], %s42
      %s44 = sshll.u32 [#allocation7], 4
      %s45 = int_to_ptr.vmem [resolvable:$true] %s44
      %50 = dma.hbm_to_vmem [thread:$0]  %s3, 2048, %s45, [#allocation6], 128, 128, 8
    $region17: #{tpu_custom_call.1} parent=1 // pred_fallthru
      _
    // Predicated region
    $region18: #{tpu_custom_call.1} parent=1 // pred_check
      _
    $region19: #{tpu_custom_call.1} parent=1 // pred_check_branch
      %52 = sbr.rel (0) target = $region21
    $region20: #{tpu_custom_call.1} parent=1 // pred_region
      _
    $region21: #{tpu_custom_call.1} parent=1 // pred_fallthru
      _
    // Predicated region
    $region22: #{tpu_custom_call.1} parent=1 // pred_check
      _
    $region23: #{tpu_custom_call.1} parent=1 // pred_check_branch
      %54 = sbr.rel (0) target = $region25
    $region24: #{tpu_custom_call.1} parent=1 // pred_region
      _
    $region25: #{tpu_custom_call.1} parent=1 // pred_fallthru
      _
    // Predicated region
    $region26: #{tpu_custom_call.1} parent=1 // pred_check
      _
    $region27: #{tpu_custom_call.1} parent=1 // pred_check_branch
      %56 = sbr.rel (0) target = $region29
    $region28: #{tpu_custom_call.1} parent=1 // pred_region
      _
    $region29: #{tpu_custom_call.1} parent=1 // pred_fallthru
      _
    // Predicated region
    $region30: #{tpu_custom_call.1} parent=1 // pred_check
      _
    $region31: #{tpu_custom_call.1} parent=1 // pred_check_branch
      %58 = sbr.rel (0) target = $region33
    $region32: #{tpu_custom_call.1} parent=1 // pred_region
      %59 = dma.done [#allocation3], 128
    $region33: #{tpu_custom_call.1} parent=1 // pred_fallthru
      _
    // Predicated region
    $region34: #{tpu_custom_call.1} parent=1 // pred_check
      _
    $region35: #{tpu_custom_call.1} parent=1 // pred_check_branch
      %61 = sbr.rel (0) target = $region37
    $region36: #{tpu_custom_call.1} parent=1 // pred_region
      %62 = dma.done [#allocation6], 2048
    $region37: #{tpu_custom_call.1} parent=1 // pred_fallthru
      _
    // Predicated region
    $region38: #{tpu_custom_call.1} parent=1 // pred_check
      _
    $region39: #{tpu_custom_call.1} parent=1 // pred_check_branch
      %64 = sbr.rel (0) target = $region41
    $region40: #{tpu_custom_call.1} parent=1 // pred_region
      %65 = dma.done [#allocation6], 2048
    $region41: #{tpu_custom_call.1} parent=1 // pred_fallthru
      _
    %v66 = vld [vmem:[#allocation2] sm:$0xff]
    %v67 = vld [vmem:[#allocation5] sm:$0xff]
    %v68 = vld [vmem:[#allocation5 + $0x8] sm:$0xff]
    %v69 = vld [vmem:[#allocation5 + $0x10] sm:$0xff]
    %v70 = vld [vmem:[#allocation5 + $0x18] sm:$0xff]
    %v71 = vld [vmem:[#allocation5 + $0x20] sm:$0xff]
    %v72 = vld [vmem:[#allocation5 + $0x28] sm:$0xff]
    %v73 = vld [vmem:[#allocation5 + $0x30] sm:$0xff]
    %v74 = vld [vmem:[#allocation5 + $0x38] sm:$0xff]
    %v75 = vld [vmem:[#allocation5 + $0x40] sm:$0xff]
    %v76 = vld [vmem:[#allocation5 + $0x48] sm:$0xff]
    %v77 = vld [vmem:[#allocation5 + $0x50] sm:$0xff]
    %v78 = vld [vmem:[#allocation5 + $0x58] sm:$0xff]
    %v79 = vld [vmem:[#allocation5 + $0x60] sm:$0xff]
    %v80 = vld [vmem:[#allocation5 + $0x68] sm:$0xff]
    %v81 = vld [vmem:[#allocation5 + $0x70] sm:$0xff]
    %v82 = vld [vmem:[#allocation5 + $0x78] sm:$0xff]
    %v83 = vld [vmem:[%s2] sm:$0x1]
    %v85 = vlaneseq
    %v86 = vshrl.u32 %v85, 7
    %v87 = vsub.s32 0, %v86
    %v88 = vrot.slane %v83, %v87
    %90 = vmatprep.subr.mxu0 0.0
    %91 = vmatpush1.msra.mxu0 %v67
    %92 = vmatprep.subr.mxu0 0.0
    %93 = vmatpush1.msra.mxu0 %v68
    %94 = vmatprep.subr.mxu0 0.0
    %95 = vmatpush1.msra.mxu0 %v69
    %96 = vmatprep.subr.mxu0 0.0
    %97 = vmatpush1.msra.mxu0 %v70
    %98 = vmatprep.subr.mxu0 0.0
    %99 = vmatpush1.msra.mxu0 %v71
    %100 = vmatprep.subr.mxu0 0.0
    %101 = vmatpush1.msra.mxu0 %v72
    %102 = vmatprep.subr.mxu0 0.0
    %103 = vmatpush1.msra.mxu0 %v73
    %104 = vmatprep.subr.mxu0 0.0
    %105 = vmatpush1.msra.mxu0 %v74
    %106 = vmatprep.subr.mxu0 0.0
    %107 = vmatpush1.msra.mxu0 %v75
    %108 = vmatprep.subr.mxu0 0.0
    %109 = vmatpush1.msra.mxu0 %v76
    %110 = vmatprep.subr.mxu0 0.0
    %111 = vmatpush1.msra.mxu0 %v77
    %112 = vmatprep.subr.mxu0 0.0
    %113 = vmatpush1.msra.mxu0 %v78
    %114 = vmatprep.subr.mxu0 0.0
    %115 = vmatpush1.msra.mxu0 %v79
    %116 = vmatprep.subr.mxu0 0.0
    %117 = vmatpush1.msra.mxu0 %v80
    %118 = vmatprep.subr.mxu0 0.0
    %119 = vmatpush1.msra.mxu0 %v81
    %120 = vmatprep.subr.mxu0 0.0
    %121 = vmatpush1.msra.mxu0 %v82
    %122 = vmatprep.subr.mxu0 0.0
    %123 = vmatpush1.msra.mxu0 0.0
    %124 = vmatprep.subr.mxu0 0.0
    %125 = vmatpush1.msra.mxu0 0.0
    %126 = vmatprep.subr.mxu0 0.0
    %127 = vmatpush1.msra.mxu0 0.0
    %128 = vmatprep.subr.mxu0 0.0
    %129 = vmatpush1.msra.mxu0 0.0
    %130 = vmatprep.subr.mxu0 0.0
    %131 = vmatpush1.msra.mxu0 0.0
    %132 = vmatprep.subr.mxu0 0.0
    %133 = vmatpush1.msra.mxu0 0.0
    %134 = vmatprep.subr.mxu0 0.0
    %135 = vmatpush1.msra.mxu0 0.0
    %136 = vmatprep.subr.mxu0 0.0
    %137 = vmatpush1.msra.mxu0 0.0
    %138 = vmatprep.subr.mxu0 0.0
    %139 = vmatpush1.msra.mxu0 0.0
    %140 = vmatprep.subr.mxu0 0.0
    %141 = vmatpush1.msra.mxu0 0.0
    %142 = vmatprep.subr.mxu0 0.0
    %143 = vmatpush1.msra.mxu0 0.0
    %144 = vmatprep.subr.mxu0 0.0
    %145 = vmatpush1.msra.mxu0 0.0
    %146 = vmatprep.subr.mxu0 0.0
    %147 = vmatpush1.msra.mxu0 0.0
    %148 = vmatprep.subr.mxu0 0.0
    %149 = vmatpush1.msra.mxu0 0.0
    %150 = vmatprep.subr.mxu0 0.0
    %151 = vmatpush1.msra.mxu0 0.0
    %152 = vmatprep.subr.mxu0 0.0
    %153 = vmatpush1.msra.mxu0 0.0
    %154 = vmatprep.mubr.f32.mxu0 0.0
    %155 = vmatmul.mubr.f32.gmra.mrb[0].mxu0 %v66
    %v156 = vpop.f32.mrb[0].mxu0
    %v157 = vadd.f32 %v88, %v156
    %v158 = vpop.f32.mrb[0].mxu0
    %159 = vdwg.mxu0
    %160 = vadd.xlane.f32.xlu0 %v157
    %v161 = vpop.xlane.xlu0 %160
    %v162 = vmul.f32 %v161, 0.015625
    %v163 = vmul.f32 %v157, %v157
    %164 = vadd.xlane.f32.xlu0 %v163
    %v165 = vpop.xlane.xlu0 %164
    %v166 = vmul.f32 %v165, 0.015625
    %v167 = vmul.f32 %v162, %v162
    %v168 = vsub.f32 %v166, %v167
    %v169 = vmax.f32 %v168, 0.0
    %v170 = vsub.f32 %v157, %v162
    %v171 = vadd.f32 %v169, 1e-05
    %v172 = vrsqrt.pop %v171
    %v173 = vmul.f32 %v170, %v172
    %v174 = vld [vmem:[%s5] sm:$0x1]
    %v176 = vlaneseq
    %v177 = vshrl.u32 %v176, 7
    %v178 = vsub.s32 0, %v177
    %v179 = vrot.slane %v174, %v178
    %v181 = vmul.f32 %v173, %v179
    %v182 = vld [vmem:[%s6] sm:$0x1]
    %v184 = vlaneseq
    %v185 = vshrl.u32 %v184, 7
    %v186 = vsub.s32 0, %v185
    %v187 = vrot.slane %v182, %v186
    %v189 = vadd.f32 %v181, %v187
    %v190 = vmax.f32 %v189, 0.0
    %v191 = vld [vmem:[#allocation7] sm:$0xff]
    %v192 = vld [vmem:[#allocation7 + $0x8] sm:$0xff]
    %v193 = vld [vmem:[#allocation7 + $0x10] sm:$0xff]
    %v194 = vld [vmem:[#allocation7 + $0x18] sm:$0xff]
    %v195 = vld [vmem:[#allocation7 + $0x20] sm:$0xff]
    %v196 = vld [vmem:[#allocation7 + $0x28] sm:$0xff]
    %v197 = vld [vmem:[#allocation7 + $0x30] sm:$0xff]
    %v198 = vld [vmem:[#allocation7 + $0x38] sm:$0xff]
    %v199 = vld [vmem:[#allocation7 + $0x40] sm:$0xff]
    %v200 = vld [vmem:[#allocation7 + $0x48] sm:$0xff]
    %v201 = vld [vmem:[#allocation7 + $0x50] sm:$0xff]
    %v202 = vld [vmem:[#allocation7 + $0x58] sm:$0xff]
    %v203 = vld [vmem:[#allocation7 + $0x60] sm:$0xff]
    %v204 = vld [vmem:[#allocation7 + $0x68] sm:$0xff]
    %v205 = vld [vmem:[#allocation7 + $0x70] sm:$0xff]
    %v206 = vld [vmem:[#allocation7 + $0x78] sm:$0xff]
    %v207 = vld [vmem:[%s4] sm:$0x1]
    %v209 = vlaneseq
    %v210 = vshrl.u32 %v209, 7
    %v211 = vsub.s32 0, %v210
    %v212 = vrot.slane %v207, %v211
    %214 = vmatprep.subr.mxu0 0.0
    %215 = vmatpush1.msra.mxu0 %v191
    %216 = vmatprep.subr.mxu0 0.0
    %217 = vmatpush1.msra.mxu0 %v192
    %218 = vmatprep.subr.mxu0 0.0
    %219 = vmatpush1.msra.mxu0 %v193
    %220 = vmatprep.subr.mxu0 0.0
    %221 = vmatpush1.msra.mxu0 %v194
    %222 = vmatprep.subr.mxu0 0.0
    %223 = vmatpush1.msra.mxu0 %v195
    %224 = vmatprep.subr.mxu0 0.0
    %225 = vmatpush1.msra.mxu0 %v196
    %226 = vmatprep.subr.mxu0 0.0
    %227 = vmatpush1.msra.mxu0 %v197
    %228 = vmatprep.subr.mxu0 0.0
    %229 = vmatpush1.msra.mxu0 %v198
    %230 = vmatprep.subr.mxu0 0.0
    %231 = vmatpush1.msra.mxu0 %v199
    %232 = vmatprep.subr.mxu0 0.0
    %233 = vmatpush1.msra.mxu0 %v200
    %234 = vmatprep.subr.mxu0 0.0
    %235 = vmatpush1.msra.mxu0 %v201
    %236 = vmatprep.subr.mxu0 0.0
    %237 = vmatpush1.msra.mxu0 %v202
    %238 = vmatprep.subr.mxu0 0.0
    %239 = vmatpush1.msra.mxu0 %v203
    %240 = vmatprep.subr.mxu0 0.0
    %241 = vmatpush1.msra.mxu0 %v204
    %242 = vmatprep.subr.mxu0 0.0
    %243 = vmatpush1.msra.mxu0 %v205
    %244 = vmatprep.subr.mxu0 0.0
    %245 = vmatpush1.msra.mxu0 %v206
    %246 = vmatprep.subr.mxu0 0.0
    %247 = vmatpush1.msra.mxu0 0.0
    %248 = vmatprep.subr.mxu0 0.0
    %249 = vmatpush1.msra.mxu0 0.0
    %250 = vmatprep.subr.mxu0 0.0
    %251 = vmatpush1.msra.mxu0 0.0
    %252 = vmatprep.subr.mxu0 0.0
    %253 = vmatpush1.msra.mxu0 0.0
    %254 = vmatprep.subr.mxu0 0.0
    %255 = vmatpush1.msra.mxu0 0.0
    %256 = vmatprep.subr.mxu0 0.0
    %257 = vmatpush1.msra.mxu0 0.0
    %258 = vmatprep.subr.mxu0 0.0
    %259 = vmatpush1.msra.mxu0 0.0
    %260 = vmatprep.subr.mxu0 0.0
    %261 = vmatpush1.msra.mxu0 0.0
    %262 = vmatprep.subr.mxu0 0.0
    %263 = vmatpush1.msra.mxu0 0.0
    %264 = vmatprep.subr.mxu0 0.0
    %265 = vmatpush1.msra.mxu0 0.0
    %266 = vmatprep.subr.mxu0 0.0
    %267 = vmatpush1.msra.mxu0 0.0
    %268 = vmatprep.subr.mxu0 0.0
    %269 = vmatpush1.msra.mxu0 0.0
    %270 = vmatprep.subr.mxu0 0.0
    %271 = vmatpush1.msra.mxu0 0.0
    %272 = vmatprep.subr.mxu0 0.0
    %273 = vmatpush1.msra.mxu0 0.0
    %274 = vmatprep.subr.mxu0 0.0
    %275 = vmatpush1.msra.mxu0 0.0
    %276 = vmatprep.subr.mxu0 0.0
    %277 = vmatpush1.msra.mxu0 0.0
    %278 = vmatprep.mubr.f32.mxu0 0.0
    %279 = vmatmul.mubr.f32.gmra.mrb[0].mxu0 %v190
    %v280 = vpop.f32.mrb[0].mxu0
    %v281 = vadd.f32 %v212, %v280
    %v282 = vpop.f32.mrb[0].mxu0
    %283 = vdwg.mxu0
    %284 = vst [vmem:[#allocation8] sm:$0xff] %v281
    // Predicated region
    $region42: #{tpu_custom_call.1} parent=1 // pred_check
      _
    $region43: #{tpu_custom_call.1} parent=1 // pred_check_branch
      %286 = sbr.rel (0) target = $region45
    $region44: #{tpu_custom_call.1} parent=1 // pred_region
      %s288 = ssub.s32 128, 128
      %289 = vsyncadd [#allocation4], %s288
      %s291 = sshll.u32 [#allocation8], 4
      %s292 = int_to_ptr.vmem [resolvable:$true] %s291
      %294 = dma.vmem_to_hbm [thread:$0]  %s292, 128, %s7, [#allocation4]
    $region45: #{tpu_custom_call.1} parent=1 // pred_fallthru
      _
    // Predicated region
    $region46: #{tpu_custom_call.1} parent=1 // pred_check
      _
    $region47: #{tpu_custom_call.1} parent=1 // pred_check_branch
      %296 = sbr.rel (0) target = $region49
    $region48: #{tpu_custom_call.1} parent=1 // pred_region
      %297 = dma.done [#allocation4], 128
    $region49: #{tpu_custom_call.1} parent=1 // pred_fallthru
      _
    %298 = vsyncpa [#allocation3], 1
    %299 = vsyncpa [#allocation6], 1
    %300 = vsyncpa [#allocation4], 1

</llo_original>
